<compile_context>
chip_gen: v7x
topology: tpu7x:2x2x1
jax: 0.10.0
libtpu: 0.0.40
codegen_flags: <defaults>
</compile_context>

<pallas_src>
import functools
import math

import jax
import jax.numpy as jnp
from jax.experimental import pallas as pl
from jax.experimental.pallas import tpu as pltpu

# ---------------- problem sizes (small, synthetic) ----------------
N_BLOCKS = 3
BATCH = 2
H = W = 16          # block latent size
HW = H * W
HIDDEN = 32
N_TOKENS = 8
IMG_H = IMG_W = 32  # target image size for expand_as


def _vmem_spec():
    # whole array resident in VMEM, single kernel invocation (no grid)
    return pl.BlockSpec(memory_space=pltpu.MemorySpace.VMEM)


# ---------------- kernel 1: per-block heatmaps + aggregation ----------------
def daam_forward_kernel(hs_ref, x_ref, o_ref, *, scale, n_blocks, batch, hw):
    x = x_ref[...]                                   # (T, D)
    hs = hs_ref[...]                                 # (N*B*HW, D)
    # One fused token-major matmul: scores (T, N*B*HW) -- lane-dense (1536).
    scores = jax.lax.dot_general(
        x, hs,
        dimension_numbers=(((1,), (1,)), ((), ())),
        preferred_element_type=jnp.float32) * scale
    # One softmax over tokens (axis 0, sublanes) for every (n, b, hw) column.
    m = scores.max(axis=0, keepdims=True)
    e = jnp.exp(scores - m)
    attn = e / e.sum(axis=0, keepdims=True)          # (T, N*B*HW)
    # Aggregate blocks per batch: sum of 128-lane-aligned column slices.
    for b in range(batch):                           # static unroll (B=2)
        acc = attn[:, b * hw:(b + 1) * hw]
        for n in range(1, n_blocks):                 # static unroll (N=3)
            c0 = (n * batch + b) * hw
            acc = acc + attn[:, c0:c0 + hw]
        o_ref[b] = acc                               # dense (T, HW) store


def daam_forward(hs_all, x):
    """hs_all: (N_BLOCKS, BATCH, HW, HIDDEN); x: (N_TOKENS, HIDDEN).
    Returns aggregated heatmaps (BATCH, N_TOKENS, H, W)."""
    scale = 1.0 / math.sqrt(HIDDEN)
    hs_flat = hs_all.reshape(N_BLOCKS * BATCH * HW, HIDDEN)  # free reshape
    out = pl.pallas_call(
        functools.partial(daam_forward_kernel, scale=scale,
                          n_blocks=N_BLOCKS, batch=BATCH, hw=HW),
        out_shape=jax.ShapeDtypeStruct((BATCH, N_TOKENS, HW), jnp.float32),
        in_specs=[_vmem_spec(), _vmem_spec()],
        out_specs=_vmem_spec(),
    )(hs_flat, x)
    # contiguous reshape only (no transpose): (B, T, HW) -> (B, T, H, W)
    return out.reshape(BATCH, N_TOKENS, H, W)


# ---------------- kernel 2: expand_as (bilinear + normalize + threshold) ----
def expand_kernel(hm_ref, wh_ref, wwt_ref, o_ref, *, absolute, threshold,
                  n_maps, in_h):
    wh = wh_ref[...]                                 # (IMG_H, H)
    wwt = wwt_ref[...]                               # (W, IMG_W) pre-transposed
    hm = hm_ref[...]                                 # (n_maps * H, W)
    # one batched column-interpolation matmul: (n_maps*H, IMG_W)
    t1 = jnp.dot(hm, wwt, preferred_element_type=jnp.float32)
    for n in range(n_maps):                          # static unroll (16)
        # sublane-aligned slice (offsets multiple of 8), tiny MXU matmul
        up = jnp.dot(wh, t1[n * in_h:(n + 1) * in_h, :],
                     preferred_element_type=jnp.float32)  # (IMG_H, IMG_W)
        if not absolute:
            mn = up.min()
            mx = up.max()
            up = (up - mn) / (mx - mn + 1e-8)
        if threshold is not None:
            up = (up > threshold).astype(jnp.float32)
        o_ref[n] = up


def _bilinear_matrix(out_size, in_size):
    # matches F.interpolate(mode="bilinear", align_corners=False)
    i = jnp.arange(out_size, dtype=jnp.float32)
    src = (i + 0.5) * (in_size / out_size) - 0.5
    src = jnp.clip(src, 0.0, in_size - 1)
    i0 = jnp.floor(src).astype(jnp.int32)
    i1 = jnp.minimum(i0 + 1, in_size - 1)
    frac = src - i0.astype(jnp.float32)
    w = (jax.nn.one_hot(i0, in_size, dtype=jnp.float32) * (1.0 - frac)[:, None]
         + jax.nn.one_hot(i1, in_size, dtype=jnp.float32) * frac[:, None])
    return w


def expand_as(heatmap, img_h, img_w, absolute=False, threshold=None):
    """heatmap: (BATCH, N_TOKENS, H, W) -> (BATCH, N_TOKENS, img_h, img_w)."""
    b, t, h, w = heatmap.shape
    n_maps = b * t
    wh = _bilinear_matrix(img_h, h)          # (img_h, h)
    wwt = _bilinear_matrix(img_w, w).T       # (w, img_w), host-side transpose
    flat = heatmap.reshape(n_maps * h, w)    # contiguous reshape (free)
    out = pl.pallas_call(
        functools.partial(expand_kernel, absolute=absolute,
                          threshold=threshold, n_maps=n_maps, in_h=h),
        out_shape=jax.ShapeDtypeStruct((n_maps, img_h, img_w), jnp.float32),
        in_specs=[_vmem_spec(), _vmem_spec(), _vmem_spec()],
        out_specs=_vmem_spec(),
    )(flat, wh, wwt)
    return out.reshape(b, t, img_h, img_w)


# ---------------- pure-JAX references ----------------
def forward_ref(hs_all, x):
    scores = jnp.einsum("nbpd,td->nbpt", hs_all, x) / math.sqrt(HIDDEN)
    attn = jax.nn.softmax(scores, axis=-1)
    agg = attn.sum(axis=0)                      # (BATCH, HW, T)
    return agg.transpose(0, 2, 1).reshape(BATCH, N_TOKENS, H, W)


def expand_ref(heatmap, img_h, img_w, absolute=False, threshold=None):
    wh = _bilinear_matrix(img_h, H)
    ww = _bilinear_matrix(img_w, W)
    up = jnp.einsum("ih,btho,jo->btij", wh, heatmap, ww)
    if not absolute:
        mn = up.min(axis=(-2, -1), keepdims=True)
        mx = up.max(axis=(-2, -1), keepdims=True)
        up = (up - mn) / (mx - mn + 1e-8)
    if threshold is not None:
        up = (up > threshold).astype(jnp.float32)
    return up


if __name__ == "__main__":
    key = jax.random.PRNGKey(0)
    k_hs, k_x = jax.random.split(key)

    # deterministic synthetic "block" hidden states (what the DAAMBlocks store)
    hs_all = jax.random.normal(k_hs, (N_BLOCKS, BATCH, HW, HIDDEN),
                               dtype=jnp.float32)
    # text embedding (query) -- forward input
    x = jax.random.normal(k_x, (N_TOKENS, HIDDEN), dtype=jnp.float32)

    heatmap = daam_forward(hs_all, x)
    heatmap = jax.block_until_ready(heatmap)

    expanded = expand_as(heatmap, IMG_H, IMG_W, absolute=False, threshold=None)
    expanded = jax.block_until_ready(expanded)

    # correctness checks against pure-JAX references
    hm_ref = forward_ref(hs_all, x)
    ex_ref = expand_ref(hm_ref, IMG_H, IMG_W, absolute=False, threshold=None)
    assert heatmap.shape == (BATCH, N_TOKENS, H, W)
    assert expanded.shape == (BATCH, N_TOKENS, IMG_H, IMG_W)
    assert jnp.allclose(heatmap, hm_ref, atol=1e-5, rtol=1e-5)
    assert jnp.allclose(expanded, ex_ref, atol=1e-5, rtol=1e-5)

    print("KERNEL_OK")
</pallas_src>

<mosaic_0001>
module attributes {stable_mosaic.version = 11 : i64} {
  func.func @daam_forward_kernel(%arg0: memref<1536x32xf32, #tpu.memory_space<vmem>>, %arg1: memref<8x32xf32, #tpu.memory_space<vmem>>, %arg2: memref<2x8x256xf32, #tpu.memory_space<vmem>>) attributes {dimension_semantics = [], scalar_prefetch = 0 : i64, scratch_operands = 0 : i64, tpu.core_type = #tpu.core_type<tc>} {
    %c0 = arith.constant 0 : index
    %c0_0 = arith.constant 0 : index
    %0 = vector.load %arg1[%c0, %c0_0] : memref<8x32xf32, #tpu.memory_space<vmem>>, vector<8x32xf32>
    %c0_1 = arith.constant 0 : index
    %c0_2 = arith.constant 0 : index
    %1 = vector.load %arg0[%c0_1, %c0_2] : memref<1536x32xf32, #tpu.memory_space<vmem>>, vector<1536x32xf32>
    %cst = arith.constant dense<0.000000e+00> : vector<8x1536xf32>
    %2 = tpu.matmul %0, %1, %cst {dimension_numbers = #tpu.dot_dimension_numbers<[1], [1], [0], [0], [0, 0, 1, 0], [], []>} : vector<8x32xf32>, vector<1536x32xf32>, vector<8x1536xf32> -> vector<8x1536xf32>
    %cst_3 = arith.constant 0.176776692 : f32
    %3 = vector.broadcast %cst_3 : f32 to vector<8x1536xf32>
    %4 = arith.mulf %2, %3 : vector<8x1536xf32>
    %cst_4 = arith.constant dense<0xFF800000> : vector<1536xf32>
    %5 = vector.multi_reduction <maximumf>, %4, %cst_4 [0] : vector<8x1536xf32> to vector<1536xf32>
    %6 = vector.shape_cast %5 : vector<1536xf32> to vector<1x1536xf32>
    %7 = vector.broadcast %6 : vector<1x1536xf32> to vector<8x1536xf32>
    %8 = arith.subf %4, %7 : vector<8x1536xf32>
    %9 = math.exp %8 : vector<8x1536xf32>
    %cst_5 = arith.constant dense<0.000000e+00> : vector<1536xf32>
    %10 = vector.multi_reduction <add>, %9, %cst_5 [0] : vector<8x1536xf32> to vector<1536xf32>
    %11 = vector.shape_cast %10 : vector<1536xf32> to vector<1x1536xf32>
    %12 = vector.broadcast %11 : vector<1x1536xf32> to vector<8x1536xf32>
    %13 = arith.divf %9, %12 : vector<8x1536xf32>
    %14 = vector.extract_strided_slice %13 {offsets = [0, 0], sizes = [8, 256], strides = [1, 1]} : vector<8x1536xf32> to vector<8x256xf32>
    %15 = vector.extract_strided_slice %13 {offsets = [0, 512], sizes = [8, 256], strides = [1, 1]} : vector<8x1536xf32> to vector<8x256xf32>
    %16 = arith.addf %14, %15 : vector<8x256xf32>
    %17 = vector.extract_strided_slice %13 {offsets = [0, 1024], sizes = [8, 256], strides = [1, 1]} : vector<8x1536xf32> to vector<8x256xf32>
    %18 = arith.addf %16, %17 : vector<8x256xf32>
    %c0_6 = arith.constant 0 : index
    %c0_7 = arith.constant 0 : index
    %c0_8 = arith.constant 0 : index
    %19 = vector.load %arg2[%c0_6, %c0_7, %c0_8] : memref<2x8x256xf32, #tpu.memory_space<vmem>>, vector<1x8x256xf32>
    %20 = vector.shape_cast %19 : vector<1x8x256xf32> to vector<8x256xf32>
    %21 = vector.shape_cast %18 : vector<8x256xf32> to vector<1x8x256xf32>
    tpu.vector_store %arg2[%c0_6, %c0_7, %c0_8], %21 {strides = array<i32>} : memref<2x8x256xf32, #tpu.memory_space<vmem>>, vector<1x8x256xf32>,
    %22 = vector.extract_strided_slice %13 {offsets = [0, 256], sizes = [8, 256], strides = [1, 1]} : vector<8x1536xf32> to vector<8x256xf32>
    %23 = vector.extract_strided_slice %13 {offsets = [0, 768], sizes = [8, 256], strides = [1, 1]} : vector<8x1536xf32> to vector<8x256xf32>
    %24 = arith.addf %22, %23 : vector<8x256xf32>
    %25 = vector.extract_strided_slice %13 {offsets = [0, 1280], sizes = [8, 256], strides = [1, 1]} : vector<8x1536xf32> to vector<8x256xf32>
    %26 = arith.addf %24, %25 : vector<8x256xf32>
    %c1 = arith.constant 1 : index
    %c0_9 = arith.constant 0 : index
    %c0_10 = arith.constant 0 : index
    %27 = vector.load %arg2[%c1, %c0_9, %c0_10] : memref<2x8x256xf32, #tpu.memory_space<vmem>>, vector<1x8x256xf32>
    %28 = vector.shape_cast %27 : vector<1x8x256xf32> to vector<8x256xf32>
    %29 = vector.shape_cast %26 : vector<8x256xf32> to vector<1x8x256xf32>
    tpu.vector_store %arg2[%c1, %c0_9, %c0_10], %29 {strides = array<i32>} : memref<2x8x256xf32, #tpu.memory_space<vmem>>, vector<1x8x256xf32>,
    return
  }
}

</mosaic_0001>

<llo_original>
// kernel: tpu_custom_call.1
$region0: #{tpu_custom_call.1}
  #allocation0 [shape = 'u32[]', space=smem, size = 0x4, offset = 0x4, fixed_abs, tag = 'smem constant byte address 0x4 - core index']
  #allocation1 [shape = 'u32[144,128]{1,0:T(1,128)}', space=vmem, size = 0x12000, scoped, tag = 'internal scratch']
  %s0 = inlined_call_operand.vmem [shape: f32[1536,32], index: 0, kind: input, shape index: {}]
  %s1 = inlined_call_operand.vmem [shape: f32[8,32], index: 1, kind: input, shape index: {}]
  %s2 = inlined_call_operand.hbm [shape: f32[2,8,256], index: 2, kind: output, shape index: {}]
  %s3 = sld [smem:[#allocation0]]
  $region18: #{tpu_custom_call.1} parent=0
    _
  %s5 = ssub.s32 1, %s3
  %s6 = scalar_select 0, %s5, %s3
  $region1: #{tpu_custom_call.1} parent=0
    #allocation2 [shape = 'u8[16384]{0}', space=vmem, size = 0x4000, scoped, tag = 'output window, operand 0, single buffered']
    #allocation3 [shape = 's32[1]{0}', space=sflag, size = 0x4, scoped, tag = 'scoped memory for tpu_custom_call.1']
    %7 = vsyncpa [#allocation3], 0
    // Predicated region
    $region2: #{tpu_custom_call.1} parent=1 // pred_check
      _
    $region3: #{tpu_custom_call.1} parent=1 // pred_check_branch
      %9 = sbr.rel (0) target = $region5
    $region4: #{tpu_custom_call.1} parent=1 // pred_region
      _
    $region5: #{tpu_custom_call.1} parent=1 // pred_fallthru
      _
    // Predicated region
    $region6: #{tpu_custom_call.1} parent=1 // pred_check
      _
    $region7: #{tpu_custom_call.1} parent=1 // pred_check_branch
      %11 = sbr.rel (0) target = $region9
    $region8: #{tpu_custom_call.1} parent=1 // pred_region
      _
    $region9: #{tpu_custom_call.1} parent=1 // pred_fallthru
      _
    %v12 = vld [vmem:[%s1] sm:$0xff]
    %v13 = vld [vmem:[%s0] sm:$0xff]
    %v14 = vld [vmem:[%s0 + $0x8] sm:$0xff]
    %v15 = vld [vmem:[%s0 + $0x10] sm:$0xff]
    %v16 = vld [vmem:[%s0 + $0x18] sm:$0xff]
    %v17 = vld [vmem:[%s0 + $0x20] sm:$0xff]
    %v18 = vld [vmem:[%s0 + $0x28] sm:$0xff]
    %v19 = vld [vmem:[%s0 + $0x30] sm:$0xff]
    %v20 = vld [vmem:[%s0 + $0x38] sm:$0xff]
    %v21 = vld [vmem:[%s0 + $0x40] sm:$0xff]
    %v22 = vld [vmem:[%s0 + $0x48] sm:$0xff]
    %v23 = vld [vmem:[%s0 + $0x50] sm:$0xff]
    %v24 = vld [vmem:[%s0 + $0x58] sm:$0xff]
    %v25 = vld [vmem:[%s0 + $0x60] sm:$0xff]
    %v26 = vld [vmem:[%s0 + $0x68] sm:$0xff]
    %v27 = vld [vmem:[%s0 + $0x70] sm:$0xff]
    %v28 = vld [vmem:[%s0 + $0x78] sm:$0xff]
    %v29 = vld [vmem:[%s0 + $0x80] sm:$0xff]
    %v30 = vld [vmem:[%s0 + $0x88] sm:$0xff]
    %v31 = vld [vmem:[%s0 + $0x90] sm:$0xff]
    %v32 = vld [vmem:[%s0 + $0x98] sm:$0xff]
    %v33 = vld [vmem:[%s0 + $0xa0] sm:$0xff]
    %v34 = vld [vmem:[%s0 + $0xa8] sm:$0xff]
    %v35 = vld [vmem:[%s0 + $0xb0] sm:$0xff]
    %v36 = vld [vmem:[%s0 + $0xb8] sm:$0xff]
    %v37 = vld [vmem:[%s0 + $0xc0] sm:$0xff]
    %v38 = vld [vmem:[%s0 + $0xc8] sm:$0xff]
    %v39 = vld [vmem:[%s0 + $0xd0] sm:$0xff]
    %v40 = vld [vmem:[%s0 + $0xd8] sm:$0xff]
    %v41 = vld [vmem:[%s0 + $0xe0] sm:$0xff]
    %v42 = vld [vmem:[%s0 + $0xe8] sm:$0xff]
    %v43 = vld [vmem:[%s0 + $0xf0] sm:$0xff]
    %v44 = vld [vmem:[%s0 + $0xf8] sm:$0xff]
    %v45 = vld [vmem:[%s0 + $0x100] sm:$0xff]
    %v46 = vld [vmem:[%s0 + $0x108] sm:$0xff]
    %v47 = vld [vmem:[%s0 + $0x110] sm:$0xff]
    %v48 = vld [vmem:[%s0 + $0x118] sm:$0xff]
    %v49 = vld [vmem:[%s0 + $0x120] sm:$0xff]
    %v50 = vld [vmem:[%s0 + $0x128] sm:$0xff]
    %v51 = vld [vmem:[%s0 + $0x130] sm:$0xff]
    %v52 = vld [vmem:[%s0 + $0x138] sm:$0xff]
    %v53 = vld [vmem:[%s0 + $0x140] sm:$0xff]
    %v54 = vld [vmem:[%s0 + $0x148] sm:$0xff]
    %v55 = vld [vmem:[%s0 + $0x150] sm:$0xff]
    %v56 = vld [vmem:[%s0 + $0x158] sm:$0xff]
    %v57 = vld [vmem:[%s0 + $0x160] sm:$0xff]
    %v58 = vld [vmem:[%s0 + $0x168] sm:$0xff]
    %v59 = vld [vmem:[%s0 + $0x170] sm:$0xff]
    %v60 = vld [vmem:[%s0 + $0x178] sm:$0xff]
    %v61 = vld [vmem:[%s0 + $0x180] sm:$0xff]
    %v62 = vld [vmem:[%s0 + $0x188] sm:$0xff]
    %v63 = vld [vmem:[%s0 + $0x190] sm:$0xff]
    %v64 = vld [vmem:[%s0 + $0x198] sm:$0xff]
    %v65 = vld [vmem:[%s0 + $0x1a0] sm:$0xff]
    %v66 = vld [vmem:[%s0 + $0x1a8] sm:$0xff]
    %v67 = vld [vmem:[%s0 + $0x1b0] sm:$0xff]
    %v68 = vld [vmem:[%s0 + $0x1b8] sm:$0xff]
    %v69 = vld [vmem:[%s0 + $0x1c0] sm:$0xff]
    %v70 = vld [vmem:[%s0 + $0x1c8] sm:$0xff]
    %v71 = vld [vmem:[%s0 + $0x1d0] sm:$0xff]
    %v72 = vld [vmem:[%s0 + $0x1d8] sm:$0xff]
    %v73 = vld [vmem:[%s0 + $0x1e0] sm:$0xff]
    %v74 = vld [vmem:[%s0 + $0x1e8] sm:$0xff]
    %v75 = vld [vmem:[%s0 + $0x1f0] sm:$0xff]
    %v76 = vld [vmem:[%s0 + $0x1f8] sm:$0xff]
    %v77 = vld [vmem:[%s0 + $0x200] sm:$0xff]
    %v78 = vld [vmem:[%s0 + $0x208] sm:$0xff]
    %v79 = vld [vmem:[%s0 + $0x210] sm:$0xff]
    %v80 = vld [vmem:[%s0 + $0x218] sm:$0xff]
    %v81 = vld [vmem:[%s0 + $0x220] sm:$0xff]
    %v82 = vld [vmem:[%s0 + $0x228] sm:$0xff]
    %v83 = vld [vmem:[%s0 + $0x230] sm:$0xff]
    %v84 = vld [vmem:[%s0 + $0x238] sm:$0xff]
    %v85 = vld [vmem:[%s0 + $0x240] sm:$0xff]
    %v86 = vld [vmem:[%s0 + $0x248] sm:$0xff]
    %v87 = vld [vmem:[%s0 + $0x250] sm:$0xff]
    %v88 = vld [vmem:[%s0 + $0x258] sm:$0xff]
    %v89 = vld [vmem:[%s0 + $0x260] sm:$0xff]
    %v90 = vld [vmem:[%s0 + $0x268] sm:$0xff]
    %v91 = vld [vmem:[%s0 + $0x270] sm:$0xff]
    %v92 = vld [vmem:[%s0 + $0x278] sm:$0xff]
    %v93 = vld [vmem:[%s0 + $0x280] sm:$0xff]
    %v94 = vld [vmem:[%s0 + $0x288] sm:$0xff]
    %v95 = vld [vmem:[%s0 + $0x290] sm:$0xff]
    %v96 = vld [vmem:[%s0 + $0x298] sm:$0xff]
    %v97 = vld [vmem:[%s0 + $0x2a0] sm:$0xff]
    %v98 = vld [vmem:[%s0 + $0x2a8] sm:$0xff]
    %v99 = vld [vmem:[%s0 + $0x2b0] sm:$0xff]
    %v100 = vld [vmem:[%s0 + $0x2b8] sm:$0xff]
    %v101 = vld [vmem:[%s0 + $0x2c0] sm:$0xff]
    %v102 = vld [vmem:[%s0 + $0x2c8] sm:$0xff]
    %v103 = vld [vmem:[%s0 + $0x2d0] sm:$0xff]
    %v104 = vld [vmem:[%s0 + $0x2d8] sm:$0xff]
    %v105 = vld [vmem:[%s0 + $0x2e0] sm:$0xff]
    %v106 = vld [vmem:[%s0 + $0x2e8] sm:$0xff]
    %v107 = vld [vmem:[%s0 + $0x2f0] sm:$0xff]
    %v108 = vld [vmem:[%s0 + $0x2f8] sm:$0xff]
    %v109 = vld [vmem:[%s0 + $0x300] sm:$0xff]
    %v110 = vld [vmem:[%s0 + $0x308] sm:$0xff]
    %v111 = vld [vmem:[%s0 + $0x310] sm:$0xff]
    %v112 = vld [vmem:[%s0 + $0x318] sm:$0xff]
    %v113 = vld [vmem:[%s0 + $0x320] sm:$0xff]
    %v114 = vld [vmem:[%s0 + $0x328] sm:$0xff]
    %v115 = vld [vmem:[%s0 + $0x330] sm:$0xff]
    %v116 = vld [vmem:[%s0 + $0x338] sm:$0xff]
    %v117 = vld [vmem:[%s0 + $0x340] sm:$0xff]
    %v118 = vld [vmem:[%s0 + $0x348] sm:$0xff]
    %v119 = vld [vmem:[%s0 + $0x350] sm:$0xff]
    %v120 = vld [vmem:[%s0 + $0x358] sm:$0xff]
    %v121 = vld [vmem:[%s0 + $0x360] sm:$0xff]
    %v122 = vld [vmem:[%s0 + $0x368] sm:$0xff]
    %v123 = vld [vmem:[%s0 + $0x370] sm:$0xff]
    %v124 = vld [vmem:[%s0 + $0x378] sm:$0xff]
    %v125 = vld [vmem:[%s0 + $0x380] sm:$0xff]
    %v126 = vld [vmem:[%s0 + $0x388] sm:$0xff]
    %v127 = vld [vmem:[%s0 + $0x390] sm:$0xff]
    %v128 = vld [vmem:[%s0 + $0x398] sm:$0xff]
    %v129 = vld [vmem:[%s0 + $0x3a0] sm:$0xff]
    %v130 = vld [vmem:[%s0 + $0x3a8] sm:$0xff]
    %v131 = vld [vmem:[%s0 + $0x3b0] sm:$0xff]
    %v132 = vld [vmem:[%s0 + $0x3b8] sm:$0xff]
    %v133 = vld [vmem:[%s0 + $0x3c0] sm:$0xff]
    %v134 = vld [vmem:[%s0 + $0x3c8] sm:$0xff]
    %v135 = vld [vmem:[%s0 + $0x3d0] sm:$0xff]
    %v136 = vld [vmem:[%s0 + $0x3d8] sm:$0xff]
    %v137 = vld [vmem:[%s0 + $0x3e0] sm:$0xff]
    %v138 = vld [vmem:[%s0 + $0x3e8] sm:$0xff]
    %v139 = vld [vmem:[%s0 + $0x3f0] sm:$0xff]
    %v140 = vld [vmem:[%s0 + $0x3f8] sm:$0xff]
    %v141 = vld [vmem:[%s0 + $0x400] sm:$0xff]
    %v142 = vld [vmem:[%s0 + $0x408] sm:$0xff]
    %v143 = vld [vmem:[%s0 + $0x410] sm:$0xff]
    %v144 = vld [vmem:[%s0 + $0x418] sm:$0xff]
    %v145 = vld [vmem:[%s0 + $0x420] sm:$0xff]
    %v146 = vld [vmem:[%s0 + $0x428] sm:$0xff]
    %v147 = vld [vmem:[%s0 + $0x430] sm:$0xff]
    %v148 = vld [vmem:[%s0 + $0x438] sm:$0xff]
    %v149 = vld [vmem:[%s0 + $0x440] sm:$0xff]
    %v150 = vld [vmem:[%s0 + $0x448] sm:$0xff]
    %v151 = vld [vmem:[%s0 + $0x450] sm:$0xff]
    %v152 = vld [vmem:[%s0 + $0x458] sm:$0xff]
    %v153 = vld [vmem:[%s0 + $0x460] sm:$0xff]
    %v154 = vld [vmem:[%s0 + $0x468] sm:$0xff]
    %v155 = vld [vmem:[%s0 + $0x470] sm:$0xff]
    %v156 = vld [vmem:[%s0 + $0x478] sm:$0xff]
    %v157 = vld [vmem:[%s0 + $0x480] sm:$0xff]
    %v158 = vld [vmem:[%s0 + $0x488] sm:$0xff]
    %v159 = vld [vmem:[%s0 + $0x490] sm:$0xff]
    %v160 = vld [vmem:[%s0 + $0x498] sm:$0xff]
    %v161 = vld [vmem:[%s0 + $0x4a0] sm:$0xff]
    %v162 = vld [vmem:[%s0 + $0x4a8] sm:$0xff]
    %v163 = vld [vmem:[%s0 + $0x4b0] sm:$0xff]
    %v164 = vld [vmem:[%s0 + $0x4b8] sm:$0xff]
    %v165 = vld [vmem:[%s0 + $0x4c0] sm:$0xff]
    %v166 = vld [vmem:[%s0 + $0x4c8] sm:$0xff]
    %v167 = vld [vmem:[%s0 + $0x4d0] sm:$0xff]
    %v168 = vld [vmem:[%s0 + $0x4d8] sm:$0xff]
    %v169 = vld [vmem:[%s0 + $0x4e0] sm:$0xff]
    %v170 = vld [vmem:[%s0 + $0x4e8] sm:$0xff]
    %v171 = vld [vmem:[%s0 + $0x4f0] sm:$0xff]
    %v172 = vld [vmem:[%s0 + $0x4f8] sm:$0xff]
    %v173 = vld [vmem:[%s0 + $0x500] sm:$0xff]
    %v174 = vld [vmem:[%s0 + $0x508] sm:$0xff]
    %v175 = vld [vmem:[%s0 + $0x510] sm:$0xff]
    %v176 = vld [vmem:[%s0 + $0x518] sm:$0xff]
    %v177 = vld [vmem:[%s0 + $0x520] sm:$0xff]
    %v178 = vld [vmem:[%s0 + $0x528] sm:$0xff]
    %v179 = vld [vmem:[%s0 + $0x530] sm:$0xff]
    %v180 = vld [vmem:[%s0 + $0x538] sm:$0xff]
    %v181 = vld [vmem:[%s0 + $0x540] sm:$0xff]
    %v182 = vld [vmem:[%s0 + $0x548] sm:$0xff]
    %v183 = vld [vmem:[%s0 + $0x550] sm:$0xff]
    %v184 = vld [vmem:[%s0 + $0x558] sm:$0xff]
    %v185 = vld [vmem:[%s0 + $0x560] sm:$0xff]
    %v186 = vld [vmem:[%s0 + $0x568] sm:$0xff]
    %v187 = vld [vmem:[%s0 + $0x570] sm:$0xff]
    %v188 = vld [vmem:[%s0 + $0x578] sm:$0xff]
    %v189 = vld [vmem:[%s0 + $0x580] sm:$0xff]
    %v190 = vld [vmem:[%s0 + $0x588] sm:$0xff]
    %v191 = vld [vmem:[%s0 + $0x590] sm:$0xff]
    %v192 = vld [vmem:[%s0 + $0x598] sm:$0xff]
    %v193 = vld [vmem:[%s0 + $0x5a0] sm:$0xff]
    %v194 = vld [vmem:[%s0 + $0x5a8] sm:$0xff]
    %v195 = vld [vmem:[%s0 + $0x5b0] sm:$0xff]
    %v196 = vld [vmem:[%s0 + $0x5b8] sm:$0xff]
    %v197 = vld [vmem:[%s0 + $0x5c0] sm:$0xff]
    %v198 = vld [vmem:[%s0 + $0x5c8] sm:$0xff]
    %v199 = vld [vmem:[%s0 + $0x5d0] sm:$0xff]
    %v200 = vld [vmem:[%s0 + $0x5d8] sm:$0xff]
    %v201 = vld [vmem:[%s0 + $0x5e0] sm:$0xff]
    %v202 = vld [vmem:[%s0 + $0x5e8] sm:$0xff]
    %v203 = vld [vmem:[%s0 + $0x5f0] sm:$0xff]
    %v204 = vld [vmem:[%s0 + $0x5f8] sm:$0xff]
    %vm205 = vcmask 261120
    %v207 = vsel %vm205, %v12, 0
    %v210 = vsel %vm205, %v13, 0
    %v213 = vsel %vm205, %v14, 0
    %v216 = vsel %vm205, %v15, 0
    %v219 = vsel %vm205, %v16, 0
    %v222 = vsel %vm205, %v17, 0
    %v225 = vsel %vm205, %v18, 0
    %v228 = vsel %vm205, %v19, 0
    %v231 = vsel %vm205, %v20, 0
    %v234 = vsel %vm205, %v21, 0
    %v237 = vsel %vm205, %v22, 0
    %v240 = vsel %vm205, %v23, 0
    %v243 = vsel %vm205, %v24, 0
    %v246 = vsel %vm205, %v25, 0
    %v249 = vsel %vm205, %v26, 0
    %v252 = vsel %vm205, %v27, 0
    %v255 = vsel %vm205, %v28, 0
    %v258 = vsel %vm205, %v29, 0
    %v261 = vsel %vm205, %v30, 0
    %v264 = vsel %vm205, %v31, 0
    %v267 = vsel %vm205, %v32, 0
    %v270 = vsel %vm205, %v33, 0
    %v273 = vsel %vm205, %v34, 0
    %v276 = vsel %vm205, %v35, 0
    %v279 = vsel %vm205, %v36, 0
    %v282 = vsel %vm205, %v37, 0
    %v285 = vsel %vm205, %v38, 0
    %v288 = vsel %vm205, %v39, 0
    %v291 = vsel %vm205, %v40, 0
    %v294 = vsel %vm205, %v41, 0
    %v297 = vsel %vm205, %v42, 0
    %v300 = vsel %vm205, %v43, 0
    %v303 = vsel %vm205, %v44, 0
    %v306 = vsel %vm205, %v45, 0
    %v309 = vsel %vm205, %v46, 0
    %v312 = vsel %vm205, %v47, 0
    %v315 = vsel %vm205, %v48, 0
    %v318 = vsel %vm205, %v49, 0
    %v321 = vsel %vm205, %v50, 0
    %v324 = vsel %vm205, %v51, 0
    %v327 = vsel %vm205, %v52, 0
    %v330 = vsel %vm205, %v53, 0
    %v333 = vsel %vm205, %v54, 0
    %v336 = vsel %vm205, %v55, 0
    %v339 = vsel %vm205, %v56, 0
    %v342 = vsel %vm205, %v57, 0
    %v345 = vsel %vm205, %v58, 0
    %v348 = vsel %vm205, %v59, 0
    %v351 = vsel %vm205, %v60, 0
    %v354 = vsel %vm205, %v61, 0
    %v357 = vsel %vm205, %v62, 0
    %v360 = vsel %vm205, %v63, 0
    %v363 = vsel %vm205, %v64, 0
    %v366 = vsel %vm205, %v65, 0
    %v369 = vsel %vm205, %v66, 0
    %v372 = vsel %vm205, %v67, 0
    %v375 = vsel %vm205, %v68, 0
    %v378 = vsel %vm205, %v69, 0
    %v381 = vsel %vm205, %v70, 0
    %v384 = vsel %vm205, %v71, 0
    %v387 = vsel %vm205, %v72, 0
    %v390 = vsel %vm205, %v73, 0
    %v393 = vsel %vm205, %v74, 0
    %v396 = vsel %vm205, %v75, 0
    %v399 = vsel %vm205, %v76, 0
    %v402 = vsel %vm205, %v77, 0
    %v405 = vsel %vm205, %v78, 0
    %v408 = vsel %vm205, %v79, 0
    %v411 = vsel %vm205, %v80, 0
    %v414 = vsel %vm205, %v81, 0
    %v417 = vsel %vm205, %v82, 0
    %v420 = vsel %vm205, %v83, 0
    %v423 = vsel %vm205, %v84, 0
    %v426 = vsel %vm205, %v85, 0
    %v429 = vsel %vm205, %v86, 0
    %v432 = vsel %vm205, %v87, 0
    %v435 = vsel %vm205, %v88, 0
    %v438 = vsel %vm205, %v89, 0
    %v441 = vsel %vm205, %v90, 0
    %v444 = vsel %vm205, %v91, 0
    %v447 = vsel %vm205, %v92, 0
    %v450 = vsel %vm205, %v93, 0
    %v453 = vsel %vm205, %v94, 0
    %v456 = vsel %vm205, %v95, 0
    %v459 = vsel %vm205, %v96, 0
    %v462 = vsel %vm205, %v97, 0
    %v465 = vsel %vm205, %v98, 0
    %v468 = vsel %vm205, %v99, 0
    %v471 = vsel %vm205, %v100, 0
    %v474 = vsel %vm205, %v101, 0
    %v477 = vsel %vm205, %v102, 0
    %v480 = vsel %vm205, %v103, 0
    %v483 = vsel %vm205, %v104, 0
    %v486 = vsel %vm205, %v105, 0
    %v489 = vsel %vm205, %v106, 0
    %v492 = vsel %vm205, %v107, 0
    %v495 = vsel %vm205, %v108, 0
    %v498 = vsel %vm205, %v109, 0
    %v501 = vsel %vm205, %v110, 0
    %v504 = vsel %vm205, %v111, 0
    %v507 = vsel %vm205, %v112, 0
    %v510 = vsel %vm205, %v113, 0
    %v513 = vsel %vm205, %v114, 0
    %v516 = vsel %vm205, %v115, 0
    %v519 = vsel %vm205, %v116, 0
    %v522 = vsel %vm205, %v117, 0
    %v525 = vsel %vm205, %v118, 0
    %v528 = vsel %vm205, %v119, 0
    %v531 = vsel %vm205, %v120, 0
    %v534 = vsel %vm205, %v121, 0
    %v537 = vsel %vm205, %v122, 0
    %v540 = vsel %vm205, %v123, 0
    %v543 = vsel %vm205, %v124, 0
    %v546 = vsel %vm205, %v125, 0
    %v549 = vsel %vm205, %v126, 0
    %v552 = vsel %vm205, %v127, 0
    %v555 = vsel %vm205, %v128, 0
    %v558 = vsel %vm205, %v129, 0
    %v561 = vsel %vm205, %v130, 0
    %v564 = vsel %vm205, %v131, 0
    %v567 = vsel %vm205, %v132, 0
    %v570 = vsel %vm205, %v133, 0
    %v573 = vsel %vm205, %v134, 0
    %v576 = vsel %vm205, %v135, 0
    %v579 = vsel %vm205, %v136, 0
    %v582 = vsel %vm205, %v137, 0
    %v585 = vsel %vm205, %v138, 0
    %v588 = vsel %vm205, %v139, 0
    %v591 = vsel %vm205, %v140, 0
    %v594 = vsel %vm205, %v141, 0
    %v597 = vsel %vm205, %v142, 0
    %v600 = vsel %vm205, %v143, 0
    %v603 = vsel %vm205, %v144, 0
    %v606 = vsel %vm205, %v145, 0
    %v609 = vsel %vm205, %v146, 0
    %v612 = vsel %vm205, %v147, 0
    %v615 = vsel %vm205, %v148, 0
    %v618 = vsel %vm205, %v149, 0
    %v621 = vsel %vm205, %v150, 0
    %v624 = vsel %vm205, %v151, 0
    %v627 = vsel %vm205, %v152, 0
    %v630 = vsel %vm205, %v153, 0
    %v633 = vsel %vm205, %v154, 0
    %v636 = vsel %vm205, %v155, 0
    %v639 = vsel %vm205, %v156, 0
    %v642 = vsel %vm205, %v157, 0
    %v645 = vsel %vm205, %v158, 0
    %v648 = vsel %vm205, %v159, 0
    %v651 = vsel %vm205, %v160, 0
    %v654 = vsel %vm205, %v161, 0
    %v657 = vsel %vm205, %v162, 0
    %v660 = vsel %vm205, %v163, 0
    %v663 = vsel %vm205, %v164, 0
    %v666 = vsel %vm205, %v165, 0
    %v669 = vsel %vm205, %v166, 0
    %v672 = vsel %vm205, %v167, 0
    %v675 = vsel %vm205, %v168, 0
    %v678 = vsel %vm205, %v169, 0
    %v681 = vsel %vm205, %v170, 0
    %v684 = vsel %vm205, %v171, 0
    %v687 = vsel %vm205, %v172, 0
    %v690 = vsel %vm205, %v173, 0
    %v693 = vsel %vm205, %v174, 0
    %v696 = vsel %vm205, %v175, 0
    %v699 = vsel %vm205, %v176, 0
    %v702 = vsel %vm205, %v177, 0
    %v705 = vsel %vm205, %v178, 0
    %v708 = vsel %vm205, %v179, 0
    %v711 = vsel %vm205, %v180, 0
    %v714 = vsel %vm205, %v181, 0
    %v717 = vsel %vm205, %v182, 0
    %v720 = vsel %vm205, %v183, 0
    %v723 = vsel %vm205, %v184, 0
    %v726 = vsel %vm205, %v185, 0
    %v729 = vsel %vm205, %v186, 0
    %v732 = vsel %vm205, %v187, 0
    %v735 = vsel %vm205, %v188, 0
    %v738 = vsel %vm205, %v189, 0
    %v741 = vsel %vm205, %v190, 0
    %v744 = vsel %vm205, %v191, 0
    %v747 = vsel %vm205, %v192, 0
    %v750 = vsel %vm205, %v193, 0
    %v753 = vsel %vm205, %v194, 0
    %v756 = vsel %vm205, %v195, 0
    %v759 = vsel %vm205, %v196, 0
    %v762 = vsel %vm205, %v197, 0
    %v765 = vsel %vm205, %v198, 0
    %v768 = vsel %vm205, %v199, 0
    %v771 = vsel %vm205, %v200, 0
    %v774 = vsel %vm205, %v201, 0
    %v777 = vsel %vm205, %v202, 0
    %v780 = vsel %vm205, %v203, 0
    %v783 = vsel %vm205, %v204, 0
    %785 = vmatprep.subr.mxu0 0.0
    %786 = vmatpush1.xpose.msra.mxu0 %v210
    %787 = vmatprep.subr.mxu0 0.0
    %788 = vmatpush1.xpose.msra.mxu0 %v213
    %789 = vmatprep.subr.mxu0 0.0
    %790 = vmatpush1.xpose.msra.mxu0 %v216
    %791 = vmatprep.subr.mxu0 0.0
    %792 = vmatpush1.xpose.msra.mxu0 %v219
    %793 = vmatprep.subr.mxu0 0.0
    %794 = vmatpush1.xpose.msra.mxu0 %v222
    %795 = vmatprep.subr.mxu0 0.0
    %796 = vmatpush1.xpose.msra.mxu0 %v225
    %797 = vmatprep.subr.mxu0 0.0
    %798 = vmatpush1.xpose.msra.mxu0 %v228
    %799 = vmatprep.subr.mxu0 0.0
    %800 = vmatpush1.xpose.msra.mxu0 %v231
    %801 = vmatprep.subr.mxu0 0.0
    %802 = vmatpush1.xpose.msra.mxu0 %v234
    %803 = vmatprep.subr.mxu0 0.0
    %804 = vmatpush1.xpose.msra.mxu0 %v237
    %805 = vmatprep.subr.mxu0 0.0
    %806 = vmatpush1.xpose.msra.mxu0 %v240
    %807 = vmatprep.subr.mxu0 0.0
    %808 = vmatpush1.xpose.msra.mxu0 %v243
    %809 = vmatprep.subr.mxu0 0.0
    %810 = vmatpush1.xpose.msra.mxu0 %v246
    %811 = vmatprep.subr.mxu0 0.0
    %812 = vmatpush1.xpose.msra.mxu0 %v249
    %813 = vmatprep.subr.mxu0 0.0
    %814 = vmatpush1.xpose.msra.mxu0 %v252
    %815 = vmatprep.subr.mxu0 0.0
    %816 = vmatpush1.xpose.msra.mxu0 %v255
    %817 = vmatprep.subr.mxu0 0.0
    %818 = vmatpush1.xpose.msra.mxu0 %v258
    %819 = vmatprep.subr.mxu0 0.0
    %820 = vmatpush1.xpose.msra.mxu0 %v261
    %821 = vmatprep.subr.mxu0 0.0
    %822 = vmatpush1.xpose.msra.mxu0 %v264
    %823 = vmatprep.subr.mxu0 0.0
    %824 = vmatpush1.xpose.msra.mxu0 %v267
    %825 = vmatprep.subr.mxu0 0.0
    %826 = vmatpush1.xpose.msra.mxu0 %v270
    %827 = vmatprep.subr.mxu0 0.0
    %828 = vmatpush1.xpose.msra.mxu0 %v273
    %829 = vmatprep.subr.mxu0 0.0
    %830 = vmatpush1.xpose.msra.mxu0 %v276
    %831 = vmatprep.subr.mxu0 0.0
    %832 = vmatpush1.xpose.msra.mxu0 %v279
    %833 = vmatprep.subr.mxu0 0.0
    %834 = vmatpush1.xpose.msra.mxu0 %v282
    %835 = vmatprep.subr.mxu0 0.0
    %836 = vmatpush1.xpose.msra.mxu0 %v285
    %837 = vmatprep.subr.mxu0 0.0
    %838 = vmatpush1.xpose.msra.mxu0 %v288
    %839 = vmatprep.subr.mxu0 0.0
    %840 = vmatpush1.xpose.msra.mxu0 %v291
    %841 = vmatprep.subr.mxu0 0.0
    %842 = vmatpush1.xpose.msra.mxu0 %v294
    %843 = vmatprep.subr.mxu0 0.0
    %844 = vmatpush1.xpose.msra.mxu0 %v297
    %845 = vmatprep.subr.mxu0 0.0
    %846 = vmatpush1.xpose.msra.mxu0 %v300
    %847 = vmatprep.subr.mxu0 0.0
    %848 = vmatpush1.xpose.msra.mxu0 %v303
    %849 = vmatprep.mubr.f32.mxu0 0.0
    %850 = vmatmul.mubr.f32.gmra.mrb[0].mxu0 %v207
    %v851 = vpop.f32.mrb[0].mxu0
    %v852 = vadd.f32 0.0, %v851
    %v853 = vpop.f32.mrb[0].mxu0
    %v854 = vadd.f32 0.0, %v853
    %855 = vdwg.mxu0
    %856 = vmatprep.subr.mxu0 0.0
    %857 = vmatpush1.xpose.msra.mxu0 %v306
    %858 = vmatprep.subr.mxu0 0.0
    %859 = vmatpush1.xpose.msra.mxu0 %v309
    %860 = vmatprep.subr.mxu0 0.0
    %861 = vmatpush1.xpose.msra.mxu0 %v312
    %862 = vmatprep.subr.mxu0 0.0
    %863 = vmatpush1.xpose.msra.mxu0 %v315
    %864 = vmatprep.subr.mxu0 0.0
    %865 = vmatpush1.xpose.msra.mxu0 %v318
    %866 = vmatprep.subr.mxu0 0.0
    %867 = vmatpush1.xpose.msra.mxu0 %v321
    %868 = vmatprep.subr.mxu0 0.0
    %869 = vmatpush1.xpose.msra.mxu0 %v324
    %870 = vmatprep.subr.mxu0 0.0
    %871 = vmatpush1.xpose.msra.mxu0 %v327
    %872 = vmatprep.subr.mxu0 0.0
    %873 = vmatpush1.xpose.msra.mxu0 %v330
    %874 = vmatprep.subr.mxu0 0.0
    %875 = vmatpush1.xpose.msra.mxu0 %v333
    %876 = vmatprep.subr.mxu0 0.0
    %877 = vmatpush1.xpose.msra.mxu0 %v336
    %878 = vmatprep.subr.mxu0 0.0
    %879 = vmatpush1.xpose.msra.mxu0 %v339
    %880 = vmatprep.subr.mxu0 0.0
    %881 = vmatpush1.xpose.msra.mxu0 %v342
    %882 = vmatprep.subr.mxu0 0.0
    %883 = vmatpush1.xpose.msra.mxu0 %v345
    %884 = vmatprep.subr.mxu0 0.0
    %885 = vmatpush1.xpose.msra.mxu0 %v348
    %886 = vmatprep.subr.mxu0 0.0
    %887 = vmatpush1.xpose.msra.mxu0 %v351
    %888 = vmatprep.subr.mxu0 0.0
    %889 = vmatpush1.xpose.msra.mxu0 %v354
    %890 = vmatprep.subr.mxu0 0.0
    %891 = vmatpush1.xpose.msra.mxu0 %v357
    %892 = vmatprep.subr.mxu0 0.0
    %893 = vmatpush1.xpose.msra.mxu0 %v360
    %894 = vmatprep.subr.mxu0 0.0
    %895 = vmatpush1.xpose.msra.mxu0 %v363
    %896 = vmatprep.subr.mxu0 0.0
    %897 = vmatpush1.xpose.msra.mxu0 %v366
    %898 = vmatprep.subr.mxu0 0.0
    %899 = vmatpush1.xpose.msra.mxu0 %v369
    %900 = vmatprep.subr.mxu0 0.0
    %901 = vmatpush1.xpose.msra.mxu0 %v372
    %902 = vmatprep.subr.mxu0 0.0
    %903 = vmatpush1.xpose.msra.mxu0 %v375
    %904 = vmatprep.subr.mxu0 0.0
    %905 = vmatpush1.xpose.msra.mxu0 %v378
    %906 = vmatprep.subr.mxu0 0.0
    %907 = vmatpush1.xpose.msra.mxu0 %v381
    %908 = vmatprep.subr.mxu0 0.0
    %909 = vmatpush1.xpose.msra.mxu0 %v384
    %910 = vmatprep.subr.mxu0 0.0
    %911 = vmatpush1.xpose.msra.mxu0 %v387
    %912 = vmatprep.subr.mxu0 0.0
    %913 = vmatpush1.xpose.msra.mxu0 %v390
    %914 = vmatprep.subr.mxu0 0.0
    %915 = vmatpush1.xpose.msra.mxu0 %v393
    %916 = vmatprep.subr.mxu0 0.0
    %917 = vmatpush1.xpose.msra.mxu0 %v396
    %918 = vmatprep.subr.mxu0 0.0
    %919 = vmatpush1.xpose.msra.mxu0 %v399
    %920 = vmatprep.mubr.f32.mxu0 0.0
    %921 = vmatmul.mubr.f32.gmra.mrb[0].mxu0 %v207
    %v922 = vpop.f32.mrb[0].mxu0
    %v923 = vadd.f32 0.0, %v922
    %v924 = vpop.f32.mrb[0].mxu0
    %v925 = vadd.f32 0.0, %v924
    %926 = vdwg.mxu0
    %927 = vmatprep.subr.mxu0 0.0
    %928 = vmatpush1.xpose.msra.mxu0 %v402
    %929 = vmatprep.subr.mxu0 0.0
    %930 = vmatpush1.xpose.msra.mxu0 %v405
    %931 = vmatprep.subr.mxu0 0.0
    %932 = vmatpush1.xpose.msra.mxu0 %v408
    %933 = vmatprep.subr.mxu0 0.0
    %934 = vmatpush1.xpose.msra.mxu0 %v411
    %935 = vmatprep.subr.mxu0 0.0
    %936 = vmatpush1.xpose.msra.mxu0 %v414
    %937 = vmatprep.subr.mxu0 0.0
    %938 = vmatpush1.xpose.msra.mxu0 %v417
    %939 = vmatprep.subr.mxu0 0.0
    %940 = vmatpush1.xpose.msra.mxu0 %v420
    %941 = vmatprep.subr.mxu0 0.0
    %942 = vmatpush1.xpose.msra.mxu0 %v423
    %943 = vmatprep.subr.mxu0 0.0
    %944 = vmatpush1.xpose.msra.mxu0 %v426
    %945 = vmatprep.subr.mxu0 0.0
    %946 = vmatpush1.xpose.msra.mxu0 %v429
    %947 = vmatprep.subr.mxu0 0.0
    %948 = vmatpush1.xpose.msra.mxu0 %v432
    %949 = vmatprep.subr.mxu0 0.0
    %950 = vmatpush1.xpose.msra.mxu0 %v435
    %951 = vmatprep.subr.mxu0 0.0
    %952 = vmatpush1.xpose.msra.mxu0 %v438
    %953 = vmatprep.subr.mxu0 0.0
    %954 = vmatpush1.xpose.msra.mxu0 %v441
    %955 = vmatprep.subr.mxu0 0.0
    %956 = vmatpush1.xpose.msra.mxu0 %v444
    %957 = vmatprep.subr.mxu0 0.0
    %958 = vmatpush1.xpose.msra.mxu0 %v447
    %959 = vmatprep.subr.mxu0 0.0
    %960 = vmatpush1.xpose.msra.mxu0 %v450
    %961 = vmatprep.subr.mxu0 0.0
    %962 = vmatpush1.xpose.msra.mxu0 %v453
    %963 = vmatprep.subr.mxu0 0.0
    %964 = vmatpush1.xpose.msra.mxu0 %v456
    %965 = vmatprep.subr.mxu0 0.0
    %966 = vmatpush1.xpose.msra.mxu0 %v459
    %967 = vmatprep.subr.mxu0 0.0
    %968 = vmatpush1.xpose.msra.mxu0 %v462
    %969 = vmatprep.subr.mxu0 0.0
    %970 = vmatpush1.xpose.msra.mxu0 %v465
    %971 = vmatprep.subr.mxu0 0.0
    %972 = vmatpush1.xpose.msra.mxu0 %v468
    %973 = vmatprep.subr.mxu0 0.0
    %974 = vmatpush1.xpose.msra.mxu0 %v471
    %975 = vmatprep.subr.mxu0 0.0
    %976 = vmatpush1.xpose.msra.mxu0 %v474
    %977 = vmatprep.subr.mxu0 0.0
    %978 = vmatpush1.xpose.msra.mxu0 %v477
    %979 = vmatprep.subr.mxu0 0.0
    %980 = vmatpush1.xpose.msra.mxu0 %v480
    %981 = vmatprep.subr.mxu0 0.0
    %982 = vmatpush1.xpose.msra.mxu0 %v483
    %983 = vmatprep.subr.mxu0 0.0
    %984 = vmatpush1.xpose.msra.mxu0 %v486
    %985 = vmatprep.subr.mxu0 0.0
    %986 = vmatpush1.xpose.msra.mxu0 %v489
    %987 = vmatprep.subr.mxu0 0.0
    %988 = vmatpush1.xpose.msra.mxu0 %v492
    %989 = vmatprep.subr.mxu0 0.0
    %990 = vmatpush1.xpose.msra.mxu0 %v495
    %991 = vmatprep.mubr.f32.mxu0 0.0
    %992 = vmatmul.mubr.f32.gmra.mrb[0].mxu0 %v207
    %v993 = vpop.f32.mrb[0].mxu0
    %v994 = vadd.f32 0.0, %v993
    %v995 = vpop.f32.mrb[0].mxu0
    %v996 = vadd.f32 0.0, %v995
    %997 = vdwg.mxu0
    %998 = vmatprep.subr.mxu0 0.0
    %999 = vmatpush1.xpose.msra.mxu0 %v498
    %1000 = vmatprep.subr.mxu0 0.0
    %1001 = vmatpush1.xpose.msra.mxu0 %v501
    %1002 = vmatprep.subr.mxu0 0.0
    %1003 = vmatpush1.xpose.msra.mxu0 %v504
    %1004 = vmatprep.subr.mxu0 0.0
    %1005 = vmatpush1.xpose.msra.mxu0 %v507
    %1006 = vmatprep.subr.mxu0 0.0
    %1007 = vmatpush1.xpose.msra.mxu0 %v510
    %1008 = vmatprep.subr.mxu0 0.0
    %1009 = vmatpush1.xpose.msra.mxu0 %v513
    %1010 = vmatprep.subr.mxu0 0.0
    %1011 = vmatpush1.xpose.msra.mxu0 %v516
    %1012 = vmatprep.subr.mxu0 0.0
    %1013 = vmatpush1.xpose.msra.mxu0 %v519
    %1014 = vmatprep.subr.mxu0 0.0
    %1015 = vmatpush1.xpose.msra.mxu0 %v522
    %1016 = vmatprep.subr.mxu0 0.0
    %1017 = vmatpush1.xpose.msra.mxu0 %v525
    %1018 = vmatprep.subr.mxu0 0.0
    %1019 = vmatpush1.xpose.msra.mxu0 %v528
    %1020 = vmatprep.subr.mxu0 0.0
    %1021 = vmatpush1.xpose.msra.mxu0 %v531
    %1022 = vmatprep.subr.mxu0 0.0
    %1023 = vmatpush1.xpose.msra.mxu0 %v534
    %1024 = vmatprep.subr.mxu0 0.0
    %1025 = vmatpush1.xpose.msra.mxu0 %v537
    %1026 = vmatprep.subr.mxu0 0.0
    %1027 = vmatpush1.xpose.msra.mxu0 %v540
    %1028 = vmatprep.subr.mxu0 0.0
    %1029 = vmatpush1.xpose.msra.mxu0 %v543
    %1030 = vmatprep.subr.mxu0 0.0
    %1031 = vmatpush1.xpose.msra.mxu0 %v546
    %1032 = vmatprep.subr.mxu0 0.0
    %1033 = vmatpush1.xpose.msra.mxu0 %v549
    %1034 = vmatprep.subr.mxu0 0.0
    %1035 = vmatpush1.xpose.msra.mxu0 %v552
    %1036 = vmatprep.subr.mxu0 0.0
    %1037 = vmatpush1.xpose.msra.mxu0 %v555
    %1038 = vmatprep.subr.mxu0 0.0
    %1039 = vmatpush1.xpose.msra.mxu0 %v558
    %1040 = vmatprep.subr.mxu0 0.0
    %1041 = vmatpush1.xpose.msra.mxu0 %v561
    %1042 = vmatprep.subr.mxu0 0.0
    %1043 = vmatpush1.xpose.msra.mxu0 %v564
    %1044 = vmatprep.subr.mxu0 0.0
    %1045 = vmatpush1.xpose.msra.mxu0 %v567
    %1046 = vmatprep.subr.mxu0 0.0
    %1047 = vmatpush1.xpose.msra.mxu0 %v570
    %1048 = vmatprep.subr.mxu0 0.0
    %1049 = vmatpush1.xpose.msra.mxu0 %v573
    %1050 = vmatprep.subr.mxu0 0.0
    %1051 = vmatpush1.xpose.msra.mxu0 %v576
    %1052 = vmatprep.subr.mxu0 0.0
    %1053 = vmatpush1.xpose.msra.mxu0 %v579
    %1054 = vmatprep.subr.mxu0 0.0
    %1055 = vmatpush1.xpose.msra.mxu0 %v582
    %1056 = vmatprep.subr.mxu0 0.0
    %1057 = vmatpush1.xpose.msra.mxu0 %v585
    %1058 = vmatprep.subr.mxu0 0.0
    %1059 = vmatpush1.xpose.msra.mxu0 %v588
    %1060 = vmatprep.subr.mxu0 0.0
    %1061 = vmatpush1.xpose.msra.mxu0 %v591
    %1062 = vmatprep.mubr.f32.mxu0 0.0
    %1063 = vmatmul.mubr.f32.gmra.mrb[0].mxu0 %v207
    %v1064 = vpop.f32.mrb[0].mxu0
    %v1065 = vadd.f32 0.0, %v1064
    %v1066 = vpop.f32.mrb[0].mxu0
    %v1067 = vadd.f32 0.0, %v1066
    %1068 = vdwg.mxu0
    %1069 = vmatprep.subr.mxu0 0.0
    %1070 = vmatpush1.xpose.msra.mxu0 %v594
    %1071 = vmatprep.subr.mxu0 0.0
    %1072 = vmatpush1.xpose.msra.mxu0 %v597
    %1073 = vmatprep.subr.mxu0 0.0
    %1074 = vmatpush1.xpose.msra.mxu0 %v600
    %1075 = vmatprep.subr.mxu0 0.0
    %1076 = vmatpush1.xpose.msra.mxu0 %v603
    %1077 = vmatprep.subr.mxu0 0.0
    %1078 = vmatpush1.xpose.msra.mxu0 %v606
    %1079 = vmatprep.subr.mxu0 0.0
    %1080 = vmatpush1.xpose.msra.mxu0 %v609
    %1081 = vmatprep.subr.mxu0 0.0
    %1082 = vmatpush1.xpose.msra.mxu0 %v612
    %1083 = vmatprep.subr.mxu0 0.0
    %1084 = vmatpush1.xpose.msra.mxu0 %v615
    %1085 = vmatprep.subr.mxu0 0.0
    %1086 = vmatpush1.xpose.msra.mxu0 %v618
    %1087 = vmatprep.subr.mxu0 0.0
    %1088 = vmatpush1.xpose.msra.mxu0 %v621
    %1089 = vmatprep.subr.mxu0 0.0
    %1090 = vmatpush1.xpose.msra.mxu0 %v624
    %1091 = vmatprep.subr.mxu0 0.0
    %1092 = vmatpush1.xpose.msra.mxu0 %v627
    %1093 = vmatprep.subr.mxu0 0.0
    %1094 = vmatpush1.xpose.msra.mxu0 %v630
    %1095 = vmatprep.subr.mxu0 0.0
    %1096 = vmatpush1.xpose.msra.mxu0 %v633
    %1097 = vmatprep.subr.mxu0 0.0
    %1098 = vmatpush1.xpose.msra.mxu0 %v636
    %1099 = vmatprep.subr.mxu0 0.0
    %1100 = vmatpush1.xpose.msra.mxu0 %v639
    %1101 = vmatprep.subr.mxu0 0.0
    %1102 = vmatpush1.xpose.msra.mxu0 %v642
    %1103 = vmatprep.subr.mxu0 0.0
    %1104 = vmatpush1.xpose.msra.mxu0 %v645
    %1105 = vmatprep.subr.mxu0 0.0
    %1106 = vmatpush1.xpose.msra.mxu0 %v648
    %1107 = vmatprep.subr.mxu0 0.0
    %1108 = vmatpush1.xpose.msra.mxu0 %v651
    %1109 = vmatprep.subr.mxu0 0.0
    %1110 = vmatpush1.xpose.msra.mxu0 %v654
    %1111 = vmatprep.subr.mxu0 0.0
    %1112 = vmatpush1.xpose.msra.mxu0 %v657
    %1113 = vmatprep.subr.mxu0 0.0
    %1114 = vmatpush1.xpose.msra.mxu0 %v660
    %1115 = vmatprep.subr.mxu0 0.0
    %1116 = vmatpush1.xpose.msra.mxu0 %v663
    %1117 = vmatprep.subr.mxu0 0.0
    %1118 = vmatpush1.xpose.msra.mxu0 %v666
    %1119 = vmatprep.subr.mxu0 0.0
    %1120 = vmatpush1.xpose.msra.mxu0 %v669
    %1121 = vmatprep.subr.mxu0 0.0
    %1122 = vmatpush1.xpose.msra.mxu0 %v672
    %1123 = vmatprep.subr.mxu0 0.0
    %1124 = vmatpush1.xpose.msra.mxu0 %v675
    %1125 = vmatprep.subr.mxu0 0.0
    %1126 = vmatpush1.xpose.msra.mxu0 %v678
    %1127 = vmatprep.subr.mxu0 0.0
    %1128 = vmatpush1.xpose.msra.mxu0 %v681
    %1129 = vmatprep.subr.mxu0 0.0
    %1130 = vmatpush1.xpose.msra.mxu0 %v684
    %1131 = vmatprep.subr.mxu0 0.0
    %1132 = vmatpush1.xpose.msra.mxu0 %v687
    %1133 = vmatprep.mubr.f32.mxu0 0.0
    %1134 = vmatmul.mubr.f32.gmra.mrb[0].mxu0 %v207
    %v1135 = vpop.f32.mrb[0].mxu0
    %v1136 = vadd.f32 0.0, %v1135
    %v1137 = vpop.f32.mrb[0].mxu0
    %v1138 = vadd.f32 0.0, %v1137
    %1139 = vdwg.mxu0
    %1140 = vmatprep.subr.mxu0 0.0
    %1141 = vmatpush1.xpose.msra.mxu0 %v690
    %1142 = vmatprep.subr.mxu0 0.0
    %1143 = vmatpush1.xpose.msra.mxu0 %v693
    %1144 = vmatprep.subr.mxu0 0.0
    %1145 = vmatpush1.xpose.msra.mxu0 %v696
    %1146 = vmatprep.subr.mxu0 0.0
    %1147 = vmatpush1.xpose.msra.mxu0 %v699
    %1148 = vmatprep.subr.mxu0 0.0
    %1149 = vmatpush1.xpose.msra.mxu0 %v702
    %1150 = vmatprep.subr.mxu0 0.0
    %1151 = vmatpush1.xpose.msra.mxu0 %v705
    %1152 = vmatprep.subr.mxu0 0.0
    %1153 = vmatpush1.xpose.msra.mxu0 %v708
    %1154 = vmatprep.subr.mxu0 0.0
    %1155 = vmatpush1.xpose.msra.mxu0 %v711
    %1156 = vmatprep.subr.mxu0 0.0
    %1157 = vmatpush1.xpose.msra.mxu0 %v714
    %1158 = vmatprep.subr.mxu0 0.0
    %1159 = vmatpush1.xpose.msra.mxu0 %v717
    %1160 = vmatprep.subr.mxu0 0.0
    %1161 = vmatpush1.xpose.msra.mxu0 %v720
    %1162 = vmatprep.subr.mxu0 0.0
    %1163 = vmatpush1.xpose.msra.mxu0 %v723
    %1164 = vmatprep.subr.mxu0 0.0
    %1165 = vmatpush1.xpose.msra.mxu0 %v726
    %1166 = vmatprep.subr.mxu0 0.0
    %1167 = vmatpush1.xpose.msra.mxu0 %v729
    %1168 = vmatprep.subr.mxu0 0.0
    %1169 = vmatpush1.xpose.msra.mxu0 %v732
    %1170 = vmatprep.subr.mxu0 0.0
    %1171 = vmatpush1.xpose.msra.mxu0 %v735
    %1172 = vmatprep.subr.mxu0 0.0
    %1173 = vmatpush1.xpose.msra.mxu0 %v738
    %1174 = vmatprep.subr.mxu0 0.0
    %1175 = vmatpush1.xpose.msra.mxu0 %v741
    %1176 = vmatprep.subr.mxu0 0.0
    %1177 = vmatpush1.xpose.msra.mxu0 %v744
    %1178 = vmatprep.subr.mxu0 0.0
    %1179 = vmatpush1.xpose.msra.mxu0 %v747
    %1180 = vmatprep.subr.mxu0 0.0
    %1181 = vmatpush1.xpose.msra.mxu0 %v750
    %1182 = vmatprep.subr.mxu0 0.0
    %1183 = vmatpush1.xpose.msra.mxu0 %v753
    %1184 = vmatprep.subr.mxu0 0.0
    %1185 = vmatpush1.xpose.msra.mxu0 %v756
    %1186 = vmatprep.subr.mxu0 0.0
    %1187 = vmatpush1.xpose.msra.mxu0 %v759
    %1188 = vmatprep.subr.mxu0 0.0
    %1189 = vmatpush1.xpose.msra.mxu0 %v762
    %1190 = vmatprep.subr.mxu0 0.0
    %1191 = vmatpush1.xpose.msra.mxu0 %v765
    %1192 = vmatprep.subr.mxu0 0.0
    %1193 = vmatpush1.xpose.msra.mxu0 %v768
    %1194 = vmatprep.subr.mxu0 0.0
    %1195 = vmatpush1.xpose.msra.mxu0 %v771
    %1196 = vmatprep.subr.mxu0 0.0
    %1197 = vmatpush1.xpose.msra.mxu0 %v774
    %1198 = vmatprep.subr.mxu0 0.0
    %1199 = vmatpush1.xpose.msra.mxu0 %v777
    %1200 = vmatprep.subr.mxu0 0.0
    %1201 = vmatpush1.xpose.msra.mxu0 %v780
    %1202 = vmatprep.subr.mxu0 0.0
    %1203 = vmatpush1.xpose.msra.mxu0 %v783
    %1204 = vmatprep.mubr.f32.mxu0 0.0
    %1205 = vmatmul.mubr.f32.gmra.mrb[0].mxu0 %v207
    %v1206 = vpop.f32.mrb[0].mxu0
    %v1207 = vadd.f32 0.0, %v1206
    %v1208 = vpop.f32.mrb[0].mxu0
    %v1209 = vadd.f32 0.0, %v1208
    %1210 = vdwg.mxu0
    %v1211 = vmul.f32 %v852, 0.17677669
    %v1212 = vmul.f32 %v854, 0.17677669
    %v1213 = vmul.f32 %v923, 0.17677669
    %v1214 = vmul.f32 %v925, 0.17677669
    %v1215 = vmul.f32 %v994, 0.17677669
    %v1216 = vmul.f32 %v996, 0.17677669
    %v1217 = vmul.f32 %v1065, 0.17677669
    %v1218 = vmul.f32 %v1067, 0.17677669
    %v1219 = vmul.f32 %v1136, 0.17677669
    %v1220 = vmul.f32 %v1138, 0.17677669
    %v1221 = vmul.f32 %v1207, 0.17677669
    %v1222 = vmul.f32 %v1209, 0.17677669
    %v1223 = vrot.slane %v1211, 4
    %v1224 = vmax.f32 %v1211, %v1223
    %v1225 = vrot.slane %v1224, 2
    %v1226 = vmax.f32 %v1224, %v1225
    %v1227 = vrot.slane %v1226, 1
    %v1228 = vmax.f32 %v1226, %v1227
    %v1229 = vrot.slane %v1212, 4
    %v1230 = vmax.f32 %v1212, %v1229
    %v1231 = vrot.slane %v1230, 2
    %v1232 = vmax.f32 %v1230, %v1231
    %v1233 = vrot.slane %v1232, 1
    %v1234 = vmax.f32 %v1232, %v1233
    %v1235 = vrot.slane %v1213, 4
    %v1236 = vmax.f32 %v1213, %v1235
    %v1237 = vrot.slane %v1236, 2
    %v1238 = vmax.f32 %v1236, %v1237
    %v1239 = vrot.slane %v1238, 1
    %v1240 = vmax.f32 %v1238, %v1239
    %v1241 = vrot.slane %v1214, 4
    %v1242 = vmax.f32 %v1214, %v1241
    %v1243 = vrot.slane %v1242, 2
    %v1244 = vmax.f32 %v1242, %v1243
    %v1245 = vrot.slane %v1244, 1
    %v1246 = vmax.f32 %v1244, %v1245
    %v1247 = vrot.slane %v1215, 4
    %v1248 = vmax.f32 %v1215, %v1247
    %v1249 = vrot.slane %v1248, 2
    %v1250 = vmax.f32 %v1248, %v1249
    %v1251 = vrot.slane %v1250, 1
    %v1252 = vmax.f32 %v1250, %v1251
    %v1253 = vrot.slane %v1216, 4
    %v1254 = vmax.f32 %v1216, %v1253
    %v1255 = vrot.slane %v1254, 2
    %v1256 = vmax.f32 %v1254, %v1255
    %v1257 = vrot.slane %v1256, 1
    %v1258 = vmax.f32 %v1256, %v1257
    %v1259 = vrot.slane %v1217, 4
    %v1260 = vmax.f32 %v1217, %v1259
    %v1261 = vrot.slane %v1260, 2
    %v1262 = vmax.f32 %v1260, %v1261
    %v1263 = vrot.slane %v1262, 1
    %v1264 = vmax.f32 %v1262, %v1263
    %v1265 = vrot.slane %v1218, 4
    %v1266 = vmax.f32 %v1218, %v1265
    %v1267 = vrot.slane %v1266, 2
    %v1268 = vmax.f32 %v1266, %v1267
    %v1269 = vrot.slane %v1268, 1
    %v1270 = vmax.f32 %v1268, %v1269
    %v1271 = vrot.slane %v1219, 4
    %v1272 = vmax.f32 %v1219, %v1271
    %v1273 = vrot.slane %v1272, 2
    %v1274 = vmax.f32 %v1272, %v1273
    %v1275 = vrot.slane %v1274, 1
    %v1276 = vmax.f32 %v1274, %v1275
    %v1277 = vrot.slane %v1220, 4
    %v1278 = vmax.f32 %v1220, %v1277
    %v1279 = vrot.slane %v1278, 2
    %v1280 = vmax.f32 %v1278, %v1279
    %v1281 = vrot.slane %v1280, 1
    %v1282 = vmax.f32 %v1280, %v1281
    %v1283 = vrot.slane %v1221, 4
    %v1284 = vmax.f32 %v1221, %v1283
    %v1285 = vrot.slane %v1284, 2
    %v1286 = vmax.f32 %v1284, %v1285
    %v1287 = vrot.slane %v1286, 1
    %v1288 = vmax.f32 %v1286, %v1287
    %v1289 = vrot.slane %v1222, 4
    %v1290 = vmax.f32 %v1222, %v1289
    %v1291 = vrot.slane %v1290, 2
    %v1292 = vmax.f32 %v1290, %v1291
    %v1293 = vrot.slane %v1292, 1
    %v1294 = vmax.f32 %v1292, %v1293
    %v1295 = vsub.f32 %v1211, %v1228
    %v1296 = vsub.f32 %v1212, %v1234
    %v1297 = vsub.f32 %v1213, %v1240
    %v1298 = vsub.f32 %v1214, %v1246
    %v1299 = vsub.f32 %v1215, %v1252
    %v1300 = vsub.f32 %v1216, %v1258
    %v1301 = vsub.f32 %v1217, %v1264
    %v1302 = vsub.f32 %v1218, %v1270
    %v1303 = vsub.f32 %v1219, %v1276
    %v1304 = vsub.f32 %v1220, %v1282
    %v1305 = vsub.f32 %v1221, %v1288
    %v1306 = vsub.f32 %v1222, %v1294
    %v1307 = vmul.f32 %v1295, 1.442695
    %v1308 = vpow.pop %v1307
    %v1309 = vmul.f32 %v1296, 1.442695
    %v1310 = vpow.pop %v1309
    %v1311 = vmul.f32 %v1297, 1.442695
    %v1312 = vpow.pop %v1311
    %v1313 = vmul.f32 %v1298, 1.442695
    %v1314 = vpow.pop %v1313
    %v1315 = vmul.f32 %v1299, 1.442695
    %v1316 = vpow.pop %v1315
    %v1317 = vmul.f32 %v1300, 1.442695
    %v1318 = vpow.pop %v1317
    %v1319 = vmul.f32 %v1301, 1.442695
    %v1320 = vpow.pop %v1319
    %v1321 = vmul.f32 %v1302, 1.442695
    %v1322 = vpow.pop %v1321
    %v1323 = vmul.f32 %v1303, 1.442695
    %v1324 = vpow.pop %v1323
    %v1325 = vmul.f32 %v1304, 1.442695
    %v1326 = vpow.pop %v1325
    %v1327 = vmul.f32 %v1305, 1.442695
    %v1328 = vpow.pop %v1327
    %v1329 = vmul.f32 %v1306, 1.442695
    %v1330 = vpow.pop %v1329
    %v1331 = vrot.slane %v1308, 4
    %v1332 = vadd.f32 %v1308, %v1331
    %v1333 = vrot.slane %v1332, 2
    %v1334 = vadd.f32 %v1332, %v1333
    %v1335 = vrot.slane %v1334, 1
    %v1336 = vadd.f32 %v1334, %v1335
    %v1337 = vrot.slane %v1310, 4
    %v1338 = vadd.f32 %v1310, %v1337
    %v1339 = vrot.slane %v1338, 2
    %v1340 = vadd.f32 %v1338, %v1339
    %v1341 = vrot.slane %v1340, 1
    %v1342 = vadd.f32 %v1340, %v1341
    %v1343 = vrot.slane %v1312, 4
    %v1344 = vadd.f32 %v1312, %v1343
    %v1345 = vrot.slane %v1344, 2
    %v1346 = vadd.f32 %v1344, %v1345
    %v1347 = vrot.slane %v1346, 1
    %v1348 = vadd.f32 %v1346, %v1347
    %v1349 = vrot.slane %v1314, 4
    %v1350 = vadd.f32 %v1314, %v1349
    %v1351 = vrot.slane %v1350, 2
    %v1352 = vadd.f32 %v1350, %v1351
    %v1353 = vrot.slane %v1352, 1
    %v1354 = vadd.f32 %v1352, %v1353
    %v1355 = vrot.slane %v1316, 4
    %v1356 = vadd.f32 %v1316, %v1355
    %v1357 = vrot.slane %v1356, 2
    %v1358 = vadd.f32 %v1356, %v1357
    %v1359 = vrot.slane %v1358, 1
    %v1360 = vadd.f32 %v1358, %v1359
    %v1361 = vrot.slane %v1318, 4
    %v1362 = vadd.f32 %v1318, %v1361
    %v1363 = vrot.slane %v1362, 2
    %v1364 = vadd.f32 %v1362, %v1363
    %v1365 = vrot.slane %v1364, 1
    %v1366 = vadd.f32 %v1364, %v1365
    %v1367 = vrot.slane %v1320, 4
    %v1368 = vadd.f32 %v1320, %v1367
    %v1369 = vrot.slane %v1368, 2
    %v1370 = vadd.f32 %v1368, %v1369
    %v1371 = vrot.slane %v1370, 1
    %v1372 = vadd.f32 %v1370, %v1371
    %v1373 = vrot.slane %v1322, 4
    %v1374 = vadd.f32 %v1322, %v1373
    %v1375 = vrot.slane %v1374, 2
    %v1376 = vadd.f32 %v1374, %v1375
    %v1377 = vrot.slane %v1376, 1
    %v1378 = vadd.f32 %v1376, %v1377
    %v1379 = vrot.slane %v1324, 4
    %v1380 = vadd.f32 %v1324, %v1379
    %v1381 = vrot.slane %v1380, 2
    %v1382 = vadd.f32 %v1380, %v1381
    %v1383 = vrot.slane %v1382, 1
    %v1384 = vadd.f32 %v1382, %v1383
    %v1385 = vrot.slane %v1326, 4
    %v1386 = vadd.f32 %v1326, %v1385
    %v1387 = vrot.slane %v1386, 2
    %v1388 = vadd.f32 %v1386, %v1387
    %v1389 = vrot.slane %v1388, 1
    %v1390 = vadd.f32 %v1388, %v1389
    %v1391 = vrot.slane %v1328, 4
    %v1392 = vadd.f32 %v1328, %v1391
    %v1393 = vrot.slane %v1392, 2
    %v1394 = vadd.f32 %v1392, %v1393
    %v1395 = vrot.slane %v1394, 1
    %v1396 = vadd.f32 %v1394, %v1395
    %v1397 = vrot.slane %v1330, 4
    %v1398 = vadd.f32 %v1330, %v1397
    %v1399 = vrot.slane %v1398, 2
    %v1400 = vadd.f32 %v1398, %v1399
    %v1401 = vrot.slane %v1400, 1
    %v1402 = vadd.f32 %v1400, %v1401
    %v1403 = vrcp.pop %v1336
    %v1404 = vmul.f32 %v1308, %v1403
    %v1405 = vrcp.pop %v1342
    %v1406 = vmul.f32 %v1310, %v1405
    %v1407 = vrcp.pop %v1348
    %v1408 = vmul.f32 %v1312, %v1407
    %v1409 = vrcp.pop %v1354
    %v1410 = vmul.f32 %v1314, %v1409
    %v1411 = vrcp.pop %v1360
    %v1412 = vmul.f32 %v1316, %v1411
    %v1413 = vrcp.pop %v1366
    %v1414 = vmul.f32 %v1318, %v1413
    %v1415 = vrcp.pop %v1372
    %v1416 = vmul.f32 %v1320, %v1415
    %v1417 = vrcp.pop %v1378
    %v1418 = vmul.f32 %v1322, %v1417
    %v1419 = vrcp.pop %v1384
    %v1420 = vmul.f32 %v1324, %v1419
    %v1421 = vrcp.pop %v1390
    %v1422 = vmul.f32 %v1326, %v1421
    %v1423 = vrcp.pop %v1396
    %v1424 = vmul.f32 %v1328, %v1423
    %v1425 = vrcp.pop %v1402
    %v1426 = vmul.f32 %v1330, %v1425
    %v1427 = vadd.f32 %v1404, %v1412
    %v1428 = vadd.f32 %v1406, %v1414
    %v1429 = vadd.f32 %v1427, %v1420
    %v1430 = vadd.f32 %v1428, %v1422
    %1431 = vst [vmem:[#allocation2] sm:$0xff] %v1429
    %1432 = vst [vmem:[#allocation2 + $0x8] sm:$0xff] %v1430
    %v1433 = vadd.f32 %v1408, %v1416
    %v1434 = vadd.f32 %v1410, %v1418
    %v1435 = vadd.f32 %v1433, %v1424
    %v1436 = vadd.f32 %v1434, %v1426
    %s1437 = scalar_lea.vmem [#allocation2], 16
    %1438 = vst [vmem:[%s1437] sm:$0xff] %v1435
    %1439 = vst [vmem:[%s1437 + $0x8] sm:$0xff] %v1436
    // Predicated region
    $region10: #{tpu_custom_call.1} parent=1 // pred_check
      _
    $region11: #{tpu_custom_call.1} parent=1 // pred_check_branch
      %1441 = sbr.rel (0) target = $region13
    $region12: #{tpu_custom_call.1} parent=1 // pred_region
      %s1443 = ssub.s32 512, 512
      %1444 = vsyncadd [#allocation3], %s1443
      %s1445 = sshll.u32 [#allocation2], 4
      %s1446 = int_to_ptr.vmem [resolvable:$true] %s1445
      %1451 = dma.vmem_to_hbm [thread:$0]  %s1446, 512, %s2, [#allocation3], 256, 256, 16
    $region13: #{tpu_custom_call.1} parent=1 // pred_fallthru
      _
    // Predicated region
    $region14: #{tpu_custom_call.1} parent=1 // pred_check
      _
    $region15: #{tpu_custom_call.1} parent=1 // pred_check_branch
      %1453 = sbr.rel (0) target = $region17
    $region16: #{tpu_custom_call.1} parent=1 // pred_region
      %1454 = dma.done [#allocation3], 512
    $region17: #{tpu_custom_call.1} parent=1 // pred_fallthru
      _
    %1455 = vsyncpa [#allocation3], 1

</llo_original>
